<compile_context>
chip_gen: v6e
topology: v6e:2x2x1
jax: 0.10.0
libtpu: 0.0.40
codegen_flags: <defaults>
</compile_context>

<pallas_src>
import jax
import jax.numpy as jnp
from jax.experimental import pallas as pl
from jax.experimental.pallas import tpu as pltpu


# --------------------------------------------------------------------------------------
# Fused multi-layer kernel.  grid = (num_layers,), "arbitrary" (state carried in VMEM).
# --------------------------------------------------------------------------------------
def _gnn_fused_kernel(x0_ref, adj_ref, eam_ref, we_ref, wl_ref, wr_ref, bl_ref,
                      out_ref, x_state):
    l = pl.program_id(0)
    num_layers = pl.num_programs(0)

    # Layer 0: load the input node features into the resident VMEM state.
    @pl.when(l == 0)
    def _():
        x_state[...] = x0_ref[...]

    x = x_state[...]                                               # (N, H)  f32

    # Mean aggregation (mean over x[src]) + edge_lin(edge_attr) + edge bias:
    #   agg = adj_mean @ x + [ea_mean | mask] @ [We ; be]
    agg = jnp.dot(adj_ref[...], x, preferred_element_type=jnp.float32)        # (N, H)
    agg = agg + jnp.dot(eam_ref[...], we_ref[...],
                        preferred_element_type=jnp.float32)                   # (N, H)

    # lin_l(agg) + lin_r(x) + bias, then ReLU.
    new_x = (jnp.dot(agg, wl_ref[...], preferred_element_type=jnp.float32)
             + jnp.dot(x, wr_ref[...], preferred_element_type=jnp.float32)
             + bl_ref[...])
    new_x = jnp.maximum(new_x, 0.0)

    x_state[...] = new_x

    @pl.when(l == num_layers - 1)
    def _():
        out_ref[...] = new_x


# --------------------------------------------------------------------------------------
# Host-side helpers.
# --------------------------------------------------------------------------------------
def _build_graph_matrices(src, dst, edge_attr, n):
    """Layer-invariant graph structure.

    Returns:
      adj_mean : (N, N)            adj_mean[i, j] = (#edges j->i) / max(deg_i, 1)
      eam      : (N, edge_dim+1)   [ mean incoming edge_attr | 1{deg_i > 0} ]
    """
    e = src.shape[0]
    ones = jnp.ones((e,), jnp.float32)
    adj = jnp.zeros((n, n), jnp.float32).at[dst, src].add(ones)          # counts j->i
    deg = jnp.sum(adj, axis=1, keepdims=True)                            # (N, 1)
    inv_deg = 1.0 / jnp.maximum(deg, 1.0)
    mask = (deg > 0).astype(jnp.float32)                                 # (N, 1)
    ea_sum = jnp.zeros((n, edge_attr.shape[1]), jnp.float32).at[dst].add(edge_attr)
    adj_mean = adj * inv_deg
    eam = jnp.concatenate([ea_sum * inv_deg, mask], axis=1)              # (N, edge_dim+1)
    return adj_mean, eam


def stack_layer_params(layer_params):
    """Stack per-layer params into the fused/stacked layout consumed by the kernel."""
    we_aug = jnp.stack([jnp.concatenate([we_t, b_e], axis=0)             # (edge_dim+1, H)
                        for (we_t, b_e, _, _, _) in layer_params])
    wl = jnp.stack([wl_t for (_, _, wl_t, _, _) in layer_params])        # (L, H, H)
    wr = jnp.stack([wr_t for (_, _, _, _, wr_t) in layer_params])        # (L, H, H)
    bl = jnp.stack([b_l for (_, _, _, b_l, _) in layer_params])          # (L, 1, H)
    return we_aug, wl, wr, bl


@jax.jit
def gnn_forward(x, src, dst, edge_attr, stacked_params):
    we_aug, wl, wr, bl = stacked_params
    n, c = x.shape
    num_layers = we_aug.shape[0]
    ed1 = we_aug.shape[1]                 # edge_dim + 1
    hidden = wl.shape[2]
    assert c == hidden, "EdgeSAGEConv.message requires in_channels == hidden_channels"

    adj_mean, eam = _build_graph_matrices(src, dst, edge_attr, n)        # (N,N), (N,ed1)

    flops = 2 * num_layers * (n * n * hidden + n * ed1 * hidden + 2 * n * hidden * hidden)
    bytes_accessed = 4 * (x.size + adj_mean.size + eam.size + we_aug.size
                          + wl.size + wr.size + bl.size + n * hidden)

    grid_spec = pltpu.PrefetchScalarGridSpec(
        num_scalar_prefetch=0,
        grid=(num_layers,),
        in_specs=[
            pl.BlockSpec((n, c), lambda l: (0, 0)),                      # x0 (loaded once)
            pl.BlockSpec((n, n), lambda l: (0, 0)),                      # adj_mean
            pl.BlockSpec((n, ed1), lambda l: (0, 0)),                    # [ea_mean | mask]
            pl.BlockSpec((pl.Squeezed(), ed1, hidden), lambda l: (l, 0, 0)),     # [We;be]
            pl.BlockSpec((pl.Squeezed(), hidden, hidden), lambda l: (l, 0, 0)),  # Wl
            pl.BlockSpec((pl.Squeezed(), hidden, hidden), lambda l: (l, 0, 0)),  # Wr
            pl.BlockSpec((pl.Squeezed(), 1, hidden), lambda l: (l, 0, 0)),       # bl
        ],
        out_specs=pl.BlockSpec((n, hidden), lambda l: (0, 0)),
        scratch_shapes=[pltpu.VMEM((n, hidden), jnp.float32)],           # resident x state
    )

    return pl.pallas_call(
        _gnn_fused_kernel,
        out_shape=jax.ShapeDtypeStruct((n, hidden), jnp.float32),
        grid_spec=grid_spec,
        compiler_params=pltpu.CompilerParams(
            dimension_semantics=("arbitrary",),          # layers are sequential (carried state)
            vmem_limit_bytes=32 * 1024 * 1024,
        ),
        cost_estimate=pl.CostEstimate(flops=flops, transcendentals=0,
                                      bytes_accessed=bytes_accessed),
    )(x, adj_mean, eam, we_aug, wl, wr, bl)


def init_gnn_params(key, in_channels, hidden_channels, num_layers, edge_dim):
    """Deterministic synthetic params (shapes match the torch module, weights pre-transposed)."""
    # NOTE: EdgeSAGEConv.message (x_j + edge_lin(edge_attr)) only type-checks when
    # in_channels == hidden_channels, so we require it.
    assert in_channels == hidden_channels
    params = []
    c_in = in_channels
    for _ in range(num_layers):
        key, k1, k2, k3, k4, k5 = jax.random.split(key, 6)
        we_t = jax.random.normal(k1, (edge_dim, hidden_channels), jnp.float32) * 0.1
        b_e = jax.random.normal(k2, (1, hidden_channels), jnp.float32) * 0.1
        wl_t = jax.random.normal(k3, (c_in, hidden_channels), jnp.float32) * 0.1
        b_l = jax.random.normal(k4, (1, hidden_channels), jnp.float32) * 0.1
        wr_t = jax.random.normal(k5, (c_in, hidden_channels), jnp.float32) * 0.1
        params.append((we_t, b_e, wl_t, b_l, wr_t))
        c_in = hidden_channels
    return tuple(params)


def _reference_forward(x, src, dst, edge_attr, layer_params):
    """Pure-JAX reference (per-edge gather + scatter-mean), for correctness checking."""
    n = x.shape[0]
    for (we_t, b_e, wl_t, b_l, wr_t) in layer_params:
        msg = x[src] + edge_attr @ we_t + b_e
        summed = jnp.zeros((n, msg.shape[1]), jnp.float32).at[dst].add(msg)
        deg = jnp.zeros((n,), jnp.float32).at[dst].add(1.0)
        agg = summed / jnp.maximum(deg, 1.0)[:, None]
        x = jnp.maximum(agg @ wl_t + b_l + x @ wr_t, 0.0)
    return x


if __name__ == "__main__":
    N, E = 16, 64
    IN_CH = HIDDEN = 128      # lane-dense feature dim (multiple of 128) per perf guidance
    EDGE_DIM = 8
    NUM_LAYERS = 3

    key = jax.random.PRNGKey(0)
    key, kx, ks, kd, ke, kp = jax.random.split(key, 6)

    x = jax.random.normal(kx, (N, IN_CH), jnp.float32)
    src = jax.random.randint(ks, (E,), 0, N, jnp.int32)
    dst = jax.random.randint(kd, (E,), 0, N, jnp.int32)
    edge_attr = jax.random.normal(ke, (E, EDGE_DIM), jnp.float32)

    layer_params = init_gnn_params(kp, IN_CH, HIDDEN, NUM_LAYERS, EDGE_DIM)
    stacked = stack_layer_params(layer_params)

    out = gnn_forward(x, src, dst, edge_attr, stacked)
    out = jax.block_until_ready(out)

    ref = _reference_forward(x, src, dst, edge_attr, layer_params)
    assert out.shape == (N, HIDDEN)
    assert jnp.allclose(out, ref, atol=1e-3, rtol=1e-3), (
        "Pallas kernel mismatch vs reference; max abs diff = "
        f"{float(jnp.max(jnp.abs(out - ref)))}")

    print("KERNEL_OK")
</pallas_src>

<mosaic_0001>
module attributes {stable_mosaic.version = 11 : i64} {
  func.func private @main(%arg0: i32) attributes {dimension_semantics = [#tpu.dimension_semantics<core_parallel>], iteration_bounds = array<i64: 2>, tpu.core_type = #tpu.core_type<sc_scalar_subcore>, window_params = []} {
    return
  }
}

module attributes {stable_mosaic.version = 11 : i64} {
  func.func private @main(%arg0: i32) attributes {dimension_semantics = [#tpu.dimension_semantics<core_parallel>], iteration_bounds = array<i64: 2>, tpu.core_type = #tpu.core_type<sc_scalar_subcore>, window_params = []} {
    return
  }
}

module attributes {stable_mosaic.version = 11 : i64} {
  func.func @_gnn_fused_kernel(%arg0: i32, %arg1: memref<16x128xf32, #tpu.memory_space<vmem>>, %arg2: memref<16x16xf32, #tpu.memory_space<vmem>>, %arg3: memref<16x9xf32, #tpu.memory_space<vmem>>, %arg4: memref<1x9x128xf32, #tpu.memory_space<vmem>>, %arg5: memref<1x128x128xf32, #tpu.memory_space<vmem>>, %arg6: memref<1x128x128xf32, #tpu.memory_space<vmem>>, %arg7: memref<1x1x128xf32, #tpu.memory_space<vmem>>, %arg8: memref<16x128xf32, #tpu.memory_space<vmem>>, %arg9: memref<16x128xf32, #tpu.memory_space<vmem>>) attributes {dimension_semantics = [#tpu.dimension_semantics<arbitrary>], iteration_bounds = array<i64: 3>, scalar_prefetch = 0 : i64, scratch_operands = 1 : i64, tpu.core_type = #tpu.core_type<tc>, window_params = [{pipeline_mode = #tpu.pipeline_mode<synchronous>, transform_indices = @transform_0, window_bounds = array<i64: 16, 128>}, {pipeline_mode = #tpu.pipeline_mode<synchronous>, transform_indices = @transform_1, window_bounds = array<i64: 16, 16>}, {pipeline_mode = #tpu.pipeline_mode<synchronous>, transform_indices = @transform_2, window_bounds = array<i64: 16, 9>}, {transform_indices = @transform_3, window_bounds = array<i64: 1, 9, 128>}, {transform_indices = @transform_4, window_bounds = array<i64: 1, 128, 128>}, {transform_indices = @transform_5, window_bounds = array<i64: 1, 128, 128>}, {transform_indices = @transform_6, window_bounds = array<i64: 1, 1, 128>}, {pipeline_mode = #tpu.pipeline_mode<synchronous>, transform_indices = @transform_7, window_bounds = array<i64: 16, 128>}]} {
    %c0_i32 = arith.constant 0 : i32
    %0 = arith.cmpi eq, %arg0, %c0_i32 : i32
    %1 = arith.extui %0 : i1 to i32
    %c0_i32_0 = arith.constant 0 : i32
    %2 = arith.cmpi ne, %1, %c0_i32_0 : i32
    scf.if %2 {
      %c0_25 = arith.constant 0 : index
      %c0_26 = arith.constant 0 : index
      %28 = vector.load %arg1[%c0_25, %c0_26] : memref<16x128xf32, #tpu.memory_space<vmem>>, vector<16x128xf32>
      %c0_27 = arith.constant 0 : index
      %c0_28 = arith.constant 0 : index
      %29 = vector.load %arg9[%c0_27, %c0_28] : memref<16x128xf32, #tpu.memory_space<vmem>>, vector<16x128xf32>
      tpu.vector_store %arg9[%c0_27, %c0_28], %28 {strides = array<i32>} : memref<16x128xf32, #tpu.memory_space<vmem>>, vector<16x128xf32>,
    } else {
    }
    %c0 = arith.constant 0 : index
    %c0_1 = arith.constant 0 : index
    %3 = vector.load %arg9[%c0, %c0_1] : memref<16x128xf32, #tpu.memory_space<vmem>>, vector<16x128xf32>
    %c0_2 = arith.constant 0 : index
    %c0_3 = arith.constant 0 : index
    %4 = vector.load %arg2[%c0_2, %c0_3] : memref<16x16xf32, #tpu.memory_space<vmem>>, vector<16x16xf32>
    %cst = arith.constant dense<0.000000e+00> : vector<16x128xf32>
    %5 = tpu.matmul %4, %3, %cst {dimension_numbers = #tpu.dot_dimension_numbers<[1], [0], [0], [1], [0, 0, 1, 1], [], []>} : vector<16x16xf32>, vector<16x128xf32>, vector<16x128xf32> -> vector<16x128xf32>
    %c0_4 = arith.constant 0 : index
    %c0_5 = arith.constant 0 : index
    %6 = vector.load %arg3[%c0_4, %c0_5] : memref<16x9xf32, #tpu.memory_space<vmem>>, vector<16x9xf32>
    %c0_6 = arith.constant 0 : index
    %c0_7 = arith.constant 0 : index
    %c0_8 = arith.constant 0 : index
    %7 = vector.load %arg4[%c0_6, %c0_7, %c0_8] : memref<1x9x128xf32, #tpu.memory_space<vmem>>, vector<1x9x128xf32>
    %8 = vector.shape_cast %7 : vector<1x9x128xf32> to vector<9x128xf32>
    %cst_9 = arith.constant dense<0.000000e+00> : vector<16x128xf32>
    %9 = tpu.matmul %6, %8, %cst_9 {dimension_numbers = #tpu.dot_dimension_numbers<[1], [0], [0], [1], [0, 0, 1, 1], [], []>} : vector<16x9xf32>, vector<9x128xf32>, vector<16x128xf32> -> vector<16x128xf32>
    %10 = arith.addf %5, %9 : vector<16x128xf32>
    %c0_10 = arith.constant 0 : index
    %c0_11 = arith.constant 0 : index
    %c0_12 = arith.constant 0 : index
    %11 = vector.load %arg5[%c0_10, %c0_11, %c0_12] : memref<1x128x128xf32, #tpu.memory_space<vmem>>, vector<1x128x128xf32>
    %12 = vector.shape_cast %11 : vector<1x128x128xf32> to vector<128x128xf32>
    %cst_13 = arith.constant dense<0.000000e+00> : vector<16x128xf32>
    %13 = tpu.matmul %10, %12, %cst_13 {dimension_numbers = #tpu.dot_dimension_numbers<[1], [0], [0], [1], [0, 0, 1, 1], [], []>} : vector<16x128xf32>, vector<128x128xf32>, vector<16x128xf32> -> vector<16x128xf32>
    %c0_14 = arith.constant 0 : index
    %c0_15 = arith.constant 0 : index
    %c0_16 = arith.constant 0 : index
    %14 = vector.load %arg6[%c0_14, %c0_15, %c0_16] : memref<1x128x128xf32, #tpu.memory_space<vmem>>, vector<1x128x128xf32>
    %15 = vector.shape_cast %14 : vector<1x128x128xf32> to vector<128x128xf32>
    %cst_17 = arith.constant dense<0.000000e+00> : vector<16x128xf32>
    %16 = tpu.matmul %3, %15, %cst_17 {dimension_numbers = #tpu.dot_dimension_numbers<[1], [0], [0], [1], [0, 0, 1, 1], [], []>} : vector<16x128xf32>, vector<128x128xf32>, vector<16x128xf32> -> vector<16x128xf32>
    %17 = arith.addf %13, %16 : vector<16x128xf32>
    %c0_18 = arith.constant 0 : index
    %c0_19 = arith.constant 0 : index
    %c0_20 = arith.constant 0 : index
    %18 = vector.load %arg7[%c0_18, %c0_19, %c0_20] : memref<1x1x128xf32, #tpu.memory_space<vmem>>, vector<1x1x128xf32>
    %19 = vector.shape_cast %18 : vector<1x1x128xf32> to vector<1x128xf32>
    %20 = vector.broadcast %19 : vector<1x128xf32> to vector<16x128xf32>
    %21 = arith.addf %17, %20 : vector<16x128xf32>
    %cst_21 = arith.constant 0.000000e+00 : f32
    %22 = vector.broadcast %cst_21 : f32 to vector<16x128xf32>
    %23 = arith.maximumf %21, %22 : vector<16x128xf32>
    %c0_22 = arith.constant 0 : index
    %c0_23 = arith.constant 0 : index
    %24 = vector.load %arg9[%c0_22, %c0_23] : memref<16x128xf32, #tpu.memory_space<vmem>>, vector<16x128xf32>
    tpu.vector_store %arg9[%c0_22, %c0_23], %23 {strides = array<i32>} : memref<16x128xf32, #tpu.memory_space<vmem>>, vector<16x128xf32>,
    %c2_i32 = arith.constant 2 : i32
    %25 = arith.cmpi eq, %arg0, %c2_i32 : i32
    %26 = arith.extui %25 : i1 to i32
    %c0_i32_24 = arith.constant 0 : i32
    %27 = arith.cmpi ne, %26, %c0_i32_24 : i32
    scf.if %27 {
      %c0_25 = arith.constant 0 : index
      %c0_26 = arith.constant 0 : index
      %28 = vector.load %arg8[%c0_25, %c0_26] : memref<16x128xf32, #tpu.memory_space<vmem>>, vector<16x128xf32>
      tpu.vector_store %arg8[%c0_25, %c0_26], %23 {strides = array<i32>} : memref<16x128xf32, #tpu.memory_space<vmem>>, vector<16x128xf32>,
    } else {
    }
    return
  }
  func.func @transform_0(%arg0: i32) -> (i32, i32) {
    %c0_i32 = arith.constant 0 : i32
    %c0_i32_0 = arith.constant 0 : i32
    %c0_i32_1 = arith.constant 0 : i32
    return %c0_i32, %c0_i32_0 : i32, i32
  }
  func.func @transform_1(%arg0: i32) -> (i32, i32) {
    %c0_i32 = arith.constant 0 : i32
    %c0_i32_0 = arith.constant 0 : i32
    %c0_i32_1 = arith.constant 0 : i32
    return %c0_i32, %c0_i32_0 : i32, i32
  }
  func.func @transform_2(%arg0: i32) -> (i32, i32) {
    %c0_i32 = arith.constant 0 : i32
    %c0_i32_0 = arith.constant 0 : i32
    %c0_i32_1 = arith.constant 0 : i32
    return %c0_i32, %c0_i32_0 : i32, i32
  }
  func.func @transform_3(%arg0: i32) -> (i32, i32, i32) {
    %c0_i32 = arith.constant 0 : i32
    %c0_i32_0 = arith.constant 0 : i32
    %c0_i32_1 = arith.constant 0 : i32
    return %arg0, %c0_i32, %c0_i32_0 : i32, i32, i32
  }
  func.func @transform_4(%arg0: i32) -> (i32, i32, i32) {
    %c0_i32 = arith.constant 0 : i32
    %c0_i32_0 = arith.constant 0 : i32
    %c0_i32_1 = arith.constant 0 : i32
    return %arg0, %c0_i32, %c0_i32_0 : i32, i32, i32
  }
  func.func @transform_5(%arg0: i32) -> (i32, i32, i32) {
    %c0_i32 = arith.constant 0 : i32
    %c0_i32_0 = arith.constant 0 : i32
    %c0_i32_1 = arith.constant 0 : i32
    return %arg0, %c0_i32, %c0_i32_0 : i32, i32, i32
  }
  func.func @transform_6(%arg0: i32) -> (i32, i32, i32) {
    %c0_i32 = arith.constant 0 : i32
    %c0_i32_0 = arith.constant 0 : i32
    %c0_i32_1 = arith.constant 0 : i32
    return %arg0, %c0_i32, %c0_i32_0 : i32, i32, i32
  }
  func.func @transform_7(%arg0: i32) -> (i32, i32) {
    %c0_i32 = arith.constant 0 : i32
    %c0_i32_0 = arith.constant 0 : i32
    %c0_i32_1 = arith.constant 0 : i32
    return %c0_i32, %c0_i32_0 : i32, i32
  }
}

</mosaic_0001>

<llo_original>
// kernel: gnn_forward.1
$region0: #{gnn_forward.1}
  #allocation0 [shape = 'u32[]', space=smem, size = 0x4, offset = 0x4, fixed_abs, tag = 'smem constant byte address 0x4 - core index']
  #allocation1 [shape = 'u32[144,128]{1,0:T(1,128)}', space=vmem, size = 0x12000, scoped, tag = 'internal scratch']
  #allocation2 [shape = 'f32[16,128]{1,0:T(8,128)}', space=vmem, size = 0x2000, scoped, tag = 'scratch operand']
  %s0 = inlined_call_operand.vmem [shape: f32[16,128], index: 0, kind: input, shape index: {}]
  %s1 = inlined_call_operand.vmem [shape: f32[16,16], index: 1, kind: input, shape index: {}]
  %s2 = inlined_call_operand.vmem [shape: f32[16,9], index: 2, kind: input, shape index: {}]
  %s3 = inlined_call_operand.vmem [shape: f32[3,9,128], index: 3, kind: input, shape index: {}]
  %s4 = inlined_call_operand.vmem [shape: f32[3,128,128], index: 4, kind: input, shape index: {}]
  %s5 = inlined_call_operand.vmem [shape: f32[3,128,128], index: 5, kind: input, shape index: {}]
  %s6 = inlined_call_operand.vmem [shape: f32[3,1,128], index: 6, kind: input, shape index: {}]
  %s7 = inlined_call_operand.hbm [shape: f32[16,128], index: 7, kind: output, shape index: {}]
  %s8 = sld [smem:[#allocation0]]
  $region69: #{gnn_forward.1} parent=0
    _
  %s10 = ssub.s32 1, %s8
  %s11 = scalar_select 0, %s10, %s8
  $region1: #{gnn_forward.1} parent=0
    #allocation3 [shape = 'u8[8192]{0}', space=vmem, size = 0x2000, scoped, tag = 'output window, operand 0, single buffered']
    #allocation4 [shape = 's32[2]{0}', space=sflag, size = 0x8, scoped, tag = 'scoped memory for gnn_forward.1']
    %12 = vsyncpa [#allocation4], 0
    loop: start=0, step=1, limit=5
    $region2: #{gnn_forward.1} parent=1 // loop_pre_header
      _
    $region3: #{gnn_forward.1} parent=1 // loop_header
      %s14 = sphi 0, %s18
      %p15 = scmp.ge.s32.totalorder %s14, 5
      %s22 = sphi 0, %s22
      %s24 = sphi 0, %s22
      %s25 = sphi 0, %s24
      %s39 = sphi 0, %s25
      %s43 = sphi 0, %s43
      %s45 = sphi 0, %s43
      %s46 = sphi 0, %s45
      %s60 = sphi 0, %s46
      %s64 = sphi 0, %s64
      %s66 = sphi 0, %s64
      %s67 = sphi 0, %s66
      %s81 = sphi 0, %s67
      %s87 = sphi 0, %s89
      %s90 = sphi 0, %s87
      %s91 = sphi 0, %s90
      %s107 = sphi 0, %s91
      %s113 = sphi 0, %s115
      %s116 = sphi 0, %s113
      %s117 = sphi 0, %s116
      %s133 = sphi 0, %s117
      %s139 = sphi 0, %s141
      %s142 = sphi 0, %s139
      %s143 = sphi 0, %s142
      %s159 = sphi 0, %s143
      %s165 = sphi 0, %s167
      %s168 = sphi 0, %s165
      %s169 = sphi 0, %s168
      %s185 = sphi 0, %s169
      %s189 = sphi 0, %s189
      %s191 = sphi 0, %s189
      %s192 = sphi 0, %s191
      %s206 = sphi 0, %s192
    $region4: #{gnn_forward.1} parent=1 // loop_header_branch
      %17 = sbr.rel (%p15) target = $region8
    $region5: #{gnn_forward.1} parent=1 // loop_body
      %s19 = ssub.s32 %s14, 1
      %s20 = ssub.s32 %s14, 2
      %s21 = sadd.s32 %s14, 1
      %s23 = sadd.s32 %s22, 1
      %p26 = scmp.eq.s32.totalorder %s14, 2
      %p27 = scmp.ne.s32.totalorder %s22, %s24
      %p28 = scmp.eq.s32.totalorder %s14, 0
      %p29 = por %p27, %p28
      %p30 = scmp.ne.s32.totalorder %s22, %s24
      %p31 = scmp.eq.s32.totalorder %s19, 2
      %p32 = por %p30, %p31
      %p33 = scmp.ne.s32.totalorder %s24, %s25
      %p34 = scmp.eq.s32.totalorder %s19, 0
      %p35 = por %p33, %p34
      %p36 = scmp.ne.s32.totalorder %s24, %s25
      %p37 = scmp.eq.s32.totalorder %s20, 2
      %p38 = por %p36, %p37
      %p40 = scmp.ne.s32.totalorder %s25, %s39
      %p41 = scmp.eq.s32.totalorder %s20, 0
      %p42 = por %p40, %p41
      %s44 = sadd.s32 %s43, 1
      %p47 = scmp.eq.s32.totalorder %s14, 2
      %p48 = scmp.ne.s32.totalorder %s43, %s45
      %p49 = scmp.eq.s32.totalorder %s14, 0
      %p50 = por %p48, %p49
      %p51 = scmp.ne.s32.totalorder %s43, %s45
      %p52 = scmp.eq.s32.totalorder %s19, 2
      %p53 = por %p51, %p52
      %p54 = scmp.ne.s32.totalorder %s45, %s46
      %p55 = scmp.eq.s32.totalorder %s19, 0
      %p56 = por %p54, %p55
      %p57 = scmp.ne.s32.totalorder %s45, %s46
      %p58 = scmp.eq.s32.totalorder %s20, 2
      %p59 = por %p57, %p58
      %p61 = scmp.ne.s32.totalorder %s46, %s60
      %p62 = scmp.eq.s32.totalorder %s20, 0
      %p63 = por %p61, %p62
      %s65 = sadd.s32 %s64, 1
      %p68 = scmp.eq.s32.totalorder %s14, 2
      %p69 = scmp.ne.s32.totalorder %s64, %s66
      %p70 = scmp.eq.s32.totalorder %s14, 0
      %p71 = por %p69, %p70
      %p72 = scmp.ne.s32.totalorder %s64, %s66
      %p73 = scmp.eq.s32.totalorder %s19, 2
      %p74 = por %p72, %p73
      %p75 = scmp.ne.s32.totalorder %s66, %s67
      %p76 = scmp.eq.s32.totalorder %s19, 0
      %p77 = por %p75, %p76
      %p78 = scmp.ne.s32.totalorder %s66, %s67
      %p79 = scmp.eq.s32.totalorder %s20, 2
      %p80 = por %p78, %p79
      %p82 = scmp.ne.s32.totalorder %s67, %s81
      %p83 = scmp.eq.s32.totalorder %s20, 0
      %p84 = por %p82, %p83
      %s85 = ssub.s32 %s14, %s21
      %p86 = scmp.eq.s32.totalorder %s85, 0
      %s88 = sadd.s32 %s87, 1
      %s89 = scalar_select %p86, %s87, %s88
      %p92 = pneg %p86
      %p93 = scmp.eq.s32.totalorder %s14, 2
      %p94 = por %p92, %p93
      %p95 = scmp.ne.s32.totalorder %s87, %s90
      %p96 = scmp.eq.s32.totalorder %s14, 0
      %p97 = por %p95, %p96
      %p98 = scmp.ne.s32.totalorder %s87, %s90
      %p99 = scmp.eq.s32.totalorder %s19, 2
      %p100 = por %p98, %p99
      %p101 = scmp.ne.s32.totalorder %s90, %s91
      %p102 = scmp.eq.s32.totalorder %s19, 0
      %p103 = por %p101, %p102
      %p104 = scmp.ne.s32.totalorder %s90, %s91
      %p105 = scmp.eq.s32.totalorder %s20, 2
      %p106 = por %p104, %p105
      %p108 = scmp.ne.s32.totalorder %s91, %s107
      %p109 = scmp.eq.s32.totalorder %s20, 0
      %p110 = por %p108, %p109
      %s111 = ssub.s32 %s14, %s21
      %p112 = scmp.eq.s32.totalorder %s111, 0
      %s114 = sadd.s32 %s113, 1
      %s115 = scalar_select %p112, %s113, %s114
      %p118 = pneg %p112
      %p119 = scmp.eq.s32.totalorder %s14, 2
      %p120 = por %p118, %p119
      %p121 = scmp.ne.s32.totalorder %s113, %s116
      %p122 = scmp.eq.s32.totalorder %s14, 0
      %p123 = por %p121, %p122
      %p124 = scmp.ne.s32.totalorder %s113, %s116
      %p125 = scmp.eq.s32.totalorder %s19, 2
      %p126 = por %p124, %p125
      %p127 = scmp.ne.s32.totalorder %s116, %s117
      %p128 = scmp.eq.s32.totalorder %s19, 0
      %p129 = por %p127, %p128
      %p130 = scmp.ne.s32.totalorder %s116, %s117
      %p131 = scmp.eq.s32.totalorder %s20, 2
      %p132 = por %p130, %p131
      %p134 = scmp.ne.s32.totalorder %s117, %s133
      %p135 = scmp.eq.s32.totalorder %s20, 0
      %p136 = por %p134, %p135
      %s137 = ssub.s32 %s14, %s21
      %p138 = scmp.eq.s32.totalorder %s137, 0
      %s140 = sadd.s32 %s139, 1
      %s141 = scalar_select %p138, %s139, %s140
      %p144 = pneg %p138
      %p145 = scmp.eq.s32.totalorder %s14, 2
      %p146 = por %p144, %p145
      %p147 = scmp.ne.s32.totalorder %s139, %s142
      %p148 = scmp.eq.s32.totalorder %s14, 0
      %p149 = por %p147, %p148
      %p150 = scmp.ne.s32.totalorder %s139, %s142
      %p151 = scmp.eq.s32.totalorder %s19, 2
      %p152 = por %p150, %p151
      %p153 = scmp.ne.s32.totalorder %s142, %s143
      %p154 = scmp.eq.s32.totalorder %s19, 0
      %p155 = por %p153, %p154
      %p156 = scmp.ne.s32.totalorder %s142, %s143
      %p157 = scmp.eq.s32.totalorder %s20, 2
      %p158 = por %p156, %p157
      %p160 = scmp.ne.s32.totalorder %s143, %s159
      %p161 = scmp.eq.s32.totalorder %s20, 0
      %p162 = por %p160, %p161
      %s163 = ssub.s32 %s14, %s21
      %p164 = scmp.eq.s32.totalorder %s163, 0
      %s166 = sadd.s32 %s165, 1
      %s167 = scalar_select %p164, %s165, %s166
      %p170 = pneg %p164
      %p171 = scmp.eq.s32.totalorder %s14, 2
      %p172 = por %p170, %p171
      %p173 = scmp.ne.s32.totalorder %s165, %s168
      %p174 = scmp.eq.s32.totalorder %s14, 0
      %p175 = por %p173, %p174
      %p176 = scmp.ne.s32.totalorder %s165, %s168
      %p177 = scmp.eq.s32.totalorder %s19, 2
      %p178 = por %p176, %p177
      %p179 = scmp.ne.s32.totalorder %s168, %s169
      %p180 = scmp.eq.s32.totalorder %s19, 0
      %p181 = por %p179, %p180
      %p182 = scmp.ne.s32.totalorder %s168, %s169
      %p183 = scmp.eq.s32.totalorder %s20, 2
      %p184 = por %p182, %p183
      %p186 = scmp.ne.s32.totalorder %s169, %s185
      %p187 = scmp.eq.s32.totalorder %s20, 0
      %p188 = por %p186, %p187
      %s190 = sadd.s32 %s189, 1
      %p193 = scmp.eq.s32.totalorder %s14, 2
      %p194 = scmp.ne.s32.totalorder %s189, %s191
      %p195 = scmp.eq.s32.totalorder %s14, 0
      %p196 = por %p194, %p195
      %p197 = scmp.ne.s32.totalorder %s189, %s191
      %p198 = scmp.eq.s32.totalorder %s19, 2
      %p199 = por %p197, %p198
      %p200 = scmp.ne.s32.totalorder %s191, %s192
      %p201 = scmp.eq.s32.totalorder %s19, 0
      %p202 = por %p200, %p201
      %p203 = scmp.ne.s32.totalorder %s191, %s192
      %p204 = scmp.eq.s32.totalorder %s20, 2
      %p205 = por %p203, %p204
      %p207 = scmp.ne.s32.totalorder %s192, %s206
      %p208 = scmp.eq.s32.totalorder %s20, 0
      %p209 = por %p207, %p208
      %p210 = scmp.le.s32.totalorder 1, %s14
      %p211 = scmp.lt.s32.totalorder %s14, 4
      %p212 = pnand %p210, %p211
      %p213 = pneg %p212
      // Predicated region
      $region9: #{gnn_forward.1} parent=5 // pred_check
        _
      $region10: #{gnn_forward.1} parent=5 // pred_check_branch
        %215 = sbr.rel (%p212) target = $region12
      $region11: #{gnn_forward.1} parent=5 // pred_region
        %s216 = ssub.s32 %s14, 1
        // Predicated region
        $region13: #{gnn_forward.1} parent=11 // pred_check
          %p217 = pneg %p35
        $region14: #{gnn_forward.1} parent=11 // pred_check_branch
          %219 = sbr.rel (%p217) target = $region16
        $region15: #{gnn_forward.1} parent=11 // pred_region
          _
        $region16: #{gnn_forward.1} parent=11 // pred_fallthru
          _
        // Predicated region
        $region17: #{gnn_forward.1} parent=11 // pred_check
          %p220 = pneg %p56
        $region18: #{gnn_forward.1} parent=11 // pred_check_branch
          %222 = sbr.rel (%p220) target = $region20
        $region19: #{gnn_forward.1} parent=11 // pred_region
          _
        $region20: #{gnn_forward.1} parent=11 // pred_fallthru
          _
        // Predicated region
        $region21: #{gnn_forward.1} parent=11 // pred_check
          %p223 = pneg %p77
        $region22: #{gnn_forward.1} parent=11 // pred_check_branch
          %225 = sbr.rel (%p223) target = $region24
        $region23: #{gnn_forward.1} parent=11 // pred_region
          _
        $region24: #{gnn_forward.1} parent=11 // pred_fallthru
          _
      $region12: #{gnn_forward.1} parent=5 // pred_fallthru
        _
      %p226 = scmp.lt.s32.totalorder %s14, 3
      // Predicated region
      $region25: #{gnn_forward.1} parent=5 // pred_check
        %p227 = pneg %p226
      $region26: #{gnn_forward.1} parent=5 // pred_check_branch
        %229 = sbr.rel (%p227) target = $region28
      $region27: #{gnn_forward.1} parent=5 // pred_region
        // Predicated region
        $region29: #{gnn_forward.1} parent=27 // pred_check
          %p230 = pneg %p97
        $region30: #{gnn_forward.1} parent=27 // pred_check_branch
          %232 = sbr.rel (%p230) target = $region32
        $region31: #{gnn_forward.1} parent=27 // pred_region
          %p233 = scmp.lt.s32.totalorder %s14, 2
          %s234 = scalar_select %p233, %s14, 2
          %s235 = smul.addr %s234, 2
          %s236 = smul.addr %s235, 8
          %s237 = scalar_lea.vmem %s3, %s236
        $region32: #{gnn_forward.1} parent=27 // pred_fallthru
          _
        // Predicated region
        $region33: #{gnn_forward.1} parent=27 // pred_check
          %p238 = pneg %p123
        $region34: #{gnn_forward.1} parent=27 // pred_check_branch
          %240 = sbr.rel (%p238) target = $region36
        $region35: #{gnn_forward.1} parent=27 // pred_region
          %p241 = scmp.lt.s32.totalorder %s14, 2
          %s242 = scalar_select %p241, %s14, 2
          %s243 = smul.addr %s242, 16
          %s244 = smul.addr %s243, 8
          %s245 = scalar_lea.vmem %s4, %s244
        $region36: #{gnn_forward.1} parent=27 // pred_fallthru
          _
        // Predicated region
        $region37: #{gnn_forward.1} parent=27 // pred_check
          %p246 = pneg %p149
        $region38: #{gnn_forward.1} parent=27 // pred_check_branch
          %248 = sbr.rel (%p246) target = $region40
        $region39: #{gnn_forward.1} parent=27 // pred_region
          %p249 = scmp.lt.s32.totalorder %s14, 2
          %s250 = scalar_select %p249, %s14, 2
          %s251 = smul.addr %s250, 16
          %s252 = smul.addr %s251, 8
          %s253 = scalar_lea.vmem %s5, %s252
        $region40: #{gnn_forward.1} parent=27 // pred_fallthru
          _
        // Predicated region
        $region41: #{gnn_forward.1} parent=27 // pred_check
          %p254 = pneg %p175
        $region42: #{gnn_forward.1} parent=27 // pred_check_branch
          %256 = sbr.rel (%p254) target = $region44
        $region43: #{gnn_forward.1} parent=27 // pred_region
          %p257 = scmp.lt.s32.totalorder %s14, 2
          %s258 = scalar_select %p257, %s14, 2
          %s259 = scalar_lea.vmem %s6, %s258
        $region44: #{gnn_forward.1} parent=27 // pred_fallthru
          _
      $region28: #{gnn_forward.1} parent=5 // pred_fallthru
        _
      %p260 = scmp.le.s32.totalorder 1, %s14
      %p261 = scmp.lt.s32.totalorder %s14, 4
      %p262 = pnand %p260, %p261
      %p263 = pneg %p262
      // Predicated region
      $region45: #{gnn_forward.1} parent=5 // pred_check
        _
      $region46: #{gnn_forward.1} parent=5 // pred_check_branch
        %265 = sbr.rel (%p262) target = $region48
      $region47: #{gnn_forward.1} parent=5 // pred_region
        %s266 = ssub.s32 %s14, 1
        %p267 = pneg %p35
        %p268 = pneg %p32
        %p269 = pneg %p56
        %p270 = pneg %p53
        %p271 = pneg %p77
        %p272 = pneg %p74
        %p273 = scmp.lt.s32.totalorder %s19, 2
        %s274 = scalar_select %p273, %s19, 2
        %s275 = smul.addr %s274, 2
        %s276 = smul.addr %s275, 8
        %s277 = scalar_lea.vmem %s3, %s276
        %p278 = pneg %p103
        %p279 = pneg %p100
        %p280 = scmp.lt.s32.totalorder %s19, 2
        %s281 = scalar_select %p280, %s19, 2
        %s282 = smul.addr %s281, 16
        %s283 = smul.addr %s282, 8
        %s284 = scalar_lea.vmem %s4, %s283
        %p285 = pneg %p129
        %p286 = pneg %p126
        %p287 = scmp.lt.s32.totalorder %s19, 2
        %s288 = scalar_select %p287, %s19, 2
        %s289 = smul.addr %s288, 16
        %s290 = smul.addr %s289, 8
        %s291 = scalar_lea.vmem %s5, %s290
        %p292 = pneg %p155
        %p293 = pneg %p152
        %p294 = scmp.lt.s32.totalorder %s19, 2
        %s295 = scalar_select %p294, %s19, 2
        %s296 = scalar_lea.vmem %s6, %s295
        %p297 = pneg %p181
        %p298 = pneg %p178
        %p299 = pneg %p202
        %p300 = pneg %p199
        %p301 = scmp.lt.s32.totalorder %s19, 2
        %s302 = scalar_select %p301, %s19, 2
        %s303 = smul.addr %s302, 2
        %s304 = smul.addr %s303, 8
        %s305 = scalar_lea.vmem %s3, %s304
        %p306 = scmp.lt.s32.totalorder %s19, 2
        %s307 = scalar_select %p306, %s19, 2
        %s308 = smul.addr %s307, 16
        %s309 = smul.addr %s308, 8
        %s310 = scalar_lea.vmem %s4, %s309
        %p311 = scmp.lt.s32.totalorder %s19, 2
        %s312 = scalar_select %p311, %s19, 2
        %s313 = smul.addr %s312, 16
        %s314 = smul.addr %s313, 8
        %s315 = scalar_lea.vmem %s5, %s314
        %p316 = scmp.lt.s32.totalorder %s19, 2
        %s317 = scalar_select %p316, %s19, 2
        %s318 = scalar_lea.vmem %s6, %s317
        %p319 = scmp.eq.s32.totalorder %s19, 0
        // Predicated region
        $region49: #{gnn_forward.1} parent=47 // pred_check
          %p320 = pneg %p319
        $region50: #{gnn_forward.1} parent=47 // pred_check_branch
          %322 = sbr.rel (%p320) target = $region52
        $region51: #{gnn_forward.1} parent=47 // pred_region
          %v323 = vld [vmem:[%s0] sm:$0xff]
          %v324 = vld [vmem:[%s0 + $0x8] sm:$0xff]
          %325 = vst [vmem:[#allocation2] sm:$0xff] %v323
          %326 = vst [vmem:[#allocation2 + $0x8] sm:$0xff] %v324
        $region52: #{gnn_forward.1} parent=47 // pred_fallthru
          _
        %v327 = vld [vmem:[#allocation2] sm:$0xff]
        %v328 = vld [vmem:[#allocation2 + $0x8] sm:$0xff]
        %v329 = vld [vmem:[%s1] sm:$0xff]
        %v330 = vld [vmem:[%s1 + $0x8] sm:$0xff]
        %v331 = vld [vmem:[%s2] sm:$0xff]
        %v332 = vld [vmem:[%s2 + $0x8] sm:$0xff]
        %v333 = vld [vmem:[%s305] sm:$0xff]
        %v334 = vld [vmem:[%s305 + $0x8] sm:$0x1]
        %vm335 = vcmask 72704
        %v337 = vsel %vm335, %v331, 0
        %v340 = vsel %vm335, %v332, 0
        %vm342 = vcmask 1040384
        %v344 = vsel %vm342, %v334, 0
        %346 = vmatprep.subr.mxu0 0.0
        %347 = vmatpush1.msra.mxu0 0.0
        %348 = vmatprep.subr.mxu0 0.0
        %349 = vmatpush1.msra.mxu0 0.0
        %350 = vmatprep.subr.mxu0 0.0
        %351 = vmatpush1.msra.mxu0 0.0
        %352 = vmatprep.subr.mxu0 0.0
        %353 = vmatpush1.msra.mxu0 0.0
        %354 = vmatprep.subr.mxu0 0.0
        %355 = vmatpush1.msra.mxu0 0.0
        %356 = vmatprep.subr.mxu0 0.0
        %357 = vmatpush1.msra.mxu0 0.0
        %358 = vmatprep.subr.mxu0 0.0
        %359 = vmatpush1.msra.mxu0 0.0
        %360 = vmatprep.subr.mxu0 0.0
        %361 = vmatpush1.msra.mxu0 0.0
        %362 = vmatprep.subr.mxu0 0.0
        %363 = vmatpush1.msra.mxu0 0.0
        %364 = vmatprep.subr.mxu0 0.0
        %365 = vmatpush1.msra.mxu0 0.0
        %366 = vmatprep.subr.mxu0 0.0
        %367 = vmatpush1.msra.mxu0 0.0
        %368 = vmatprep.subr.mxu0 0.0
        %369 = vmatpush1.msra.mxu0 0.0
        %370 = vmatprep.subr.mxu0 0.0
        %371 = vmatpush1.msra.mxu0 0.0
        %372 = vmatprep.subr.mxu0 0.0
        %373 = vmatpush1.msra.mxu0 0.0
        %374 = vmatprep.subr.mxu0 0.0
        %375 = vmatpush1.msra.mxu0 %v344
        %376 = vmatprep.subr.mxu0 0.0
        %377 = vmatpush1.msra.mxu0 %v333
        %378 = vmatprep.subr.mxu0 0.0
        %379 = vmatpush2.msra.mxu0 0.0
        %380 = vmatprep.subr.mxu0 0.0
        %381 = vmatpush2.msra.mxu0 0.0
        %382 = vmatprep.subr.mxu0 0.0
        %383 = vmatpush2.msra.mxu0 0.0
        %384 = vmatprep.subr.mxu0 0.0
        %385 = vmatpush2.msra.mxu0 0.0
        %386 = vmatprep.subr.mxu0 0.0
        %387 = vmatpush2.msra.mxu0 0.0
        %388 = vmatprep.subr.mxu0 0.0
        %389 = vmatpush2.msra.mxu0 0.0
        %390 = vmatprep.subr.mxu0 0.0
        %391 = vmatpush2.msra.mxu0 0.0
        %392 = vmatprep.subr.mxu0 0.0
        %393 = vmatpush2.msra.mxu0 0.0
        %394 = vmatprep.subr.mxu0 0.0
        %395 = vmatpush2.msra.mxu0 0.0
        %396 = vmatprep.subr.mxu0 0.0
        %397 = vmatpush2.msra.mxu0 0.0
        %398 = vmatprep.subr.mxu0 0.0
        %399 = vmatpush2.msra.mxu0 0.0
        %400 = vmatprep.subr.mxu0 0.0
        %401 = vmatpush2.msra.mxu0 0.0
        %402 = vmatprep.subr.mxu0 0.0
        %403 = vmatpush2.msra.mxu0 0.0
        %404 = vmatprep.subr.mxu0 0.0
        %405 = vmatpush2.msra.mxu0 0.0
        %406 = vmatprep.subr.mxu0 0.0
        %407 = vmatpush2.msra.mxu0 0.0
        %408 = vmatprep.subr.mxu0 0.0
        %409 = vmatpush2.msra.mxu0 0.0
        %410 = vmatprep.mubr.f32.mxu0 0.0
        %411 = vmatmul.mubr.f32.gmra.mxu0 %v337
        %v412 = vpop.f32.mrf.mxu0
        %v413 = vadd.f32 0.0, %v412
        %v414 = vpop.f32.mrf.mxu0
        %415 = vmatprep.mubr.f32.mxu0 0.0
        %416 = vmatmul.mubr.f32.gmra.mxu0 %v340
        %v417 = vpop.f32.mrf.mxu0
        %v418 = vadd.f32 0.0, %v417
        %v419 = vpop.f32.mrf.mxu0
        %420 = vdwg.mxu0
        %vm421 = vcmask 130048
        %v423 = vsel %vm421, %v329, 0
        %v426 = vsel %vm421, %v330, 0
        %428 = vmatprep.subr.mxu0 0.0
        %429 = vmatpush1.msra.mxu0 0.0
        %430 = vmatprep.subr.mxu0 0.0
        %431 = vmatpush1.msra.mxu0 0.0
        %432 = vmatprep.subr.mxu0 0.0
        %433 = vmatpush1.msra.mxu0 0.0
        %434 = vmatprep.subr.mxu0 0.0
        %435 = vmatpush1.msra.mxu0 0.0
        %436 = vmatprep.subr.mxu0 0.0
        %437 = vmatpush1.msra.mxu0 0.0
        %438 = vmatprep.subr.mxu0 0.0
        %439 = vmatpush1.msra.mxu0 0.0
        %440 = vmatprep.subr.mxu0 0.0
        %441 = vmatpush1.msra.mxu0 0.0
        %442 = vmatprep.subr.mxu0 0.0
        %443 = vmatpush1.msra.mxu0 0.0
        %444 = vmatprep.subr.mxu0 0.0
        %445 = vmatpush1.msra.mxu0 0.0
        %446 = vmatprep.subr.mxu0 0.0
        %447 = vmatpush1.msra.mxu0 0.0
        %448 = vmatprep.subr.mxu0 0.0
        %449 = vmatpush1.msra.mxu0 0.0
        %450 = vmatprep.subr.mxu0 0.0
        %451 = vmatpush1.msra.mxu0 0.0
        %452 = vmatprep.subr.mxu0 0.0
        %453 = vmatpush1.msra.mxu0 0.0
        %454 = vmatprep.subr.mxu0 0.0
        %455 = vmatpush1.msra.mxu0 0.0
        %456 = vmatprep.subr.mxu0 0.0
        %457 = vmatpush1.msra.mxu0 %v328
        %458 = vmatprep.subr.mxu0 0.0
        %459 = vmatpush1.msra.mxu0 %v327
        %460 = vmatprep.subr.mxu0 0.0
        %461 = vmatpush2.msra.mxu0 0.0
        %462 = vmatprep.subr.mxu0 0.0
        %463 = vmatpush2.msra.mxu0 0.0
        %464 = vmatprep.subr.mxu0 0.0
        %465 = vmatpush2.msra.mxu0 0.0
        %466 = vmatprep.subr.mxu0 0.0
        %467 = vmatpush2.msra.mxu0 0.0
        %468 = vmatprep.subr.mxu0 0.0
        %469 = vmatpush2.msra.mxu0 0.0
        %470 = vmatprep.subr.mxu0 0.0
        %471 = vmatpush2.msra.mxu0 0.0
        %472 = vmatprep.subr.mxu0 0.0
        %473 = vmatpush2.msra.mxu0 0.0
        %474 = vmatprep.subr.mxu0 0.0
        %475 = vmatpush2.msra.mxu0 0.0
        %476 = vmatprep.subr.mxu0 0.0
        %477 = vmatpush2.msra.mxu0 0.0
        %478 = vmatprep.subr.mxu0 0.0
        %479 = vmatpush2.msra.mxu0 0.0
        %480 = vmatprep.subr.mxu0 0.0
        %481 = vmatpush2.msra.mxu0 0.0
        %482 = vmatprep.subr.mxu0 0.0
        %483 = vmatpush2.msra.mxu0 0.0
        %484 = vmatprep.subr.mxu0 0.0
        %485 = vmatpush2.msra.mxu0 0.0
        %486 = vmatprep.subr.mxu0 0.0
        %487 = vmatpush2.msra.mxu0 0.0
        %488 = vmatprep.subr.mxu0 0.0
        %489 = vmatpush2.msra.mxu0 0.0
        %490 = vmatprep.subr.mxu0 0.0
        %491 = vmatpush2.msra.mxu0 0.0
        %492 = vmatprep.mubr.f32.mxu0 0.0
        %493 = vmatmul.mubr.f32.gmra.mxu0 %v423
        %v494 = vpop.f32.mrf.mxu0
        %v495 = vadd.f32 %v413, %v494
        %v496 = vpop.f32.mrf.mxu0
        %497 = vmatprep.mubr.f32.mxu0 0.0
        %498 = vmatmul.mubr.f32.gmra.mxu0 %v426
        %v499 = vpop.f32.mrf.mxu0
        %v500 = vadd.f32 %v418, %v499
        %v501 = vpop.f32.mrf.mxu0
        %502 = vdwg.mxu0
        %v503 = vld [vmem:[%s310] sm:$0xff]
        %v504 = vld [vmem:[%s310 + $0x8] sm:$0xff]
        %v505 = vld [vmem:[%s310 + $0x10] sm:$0xff]
        %v506 = vld [vmem:[%s310 + $0x18] sm:$0xff]
        %v507 = vld [vmem:[%s310 + $0x20] sm:$0xff]
        %v508 = vld [vmem:[%s310 + $0x28] sm:$0xff]
        %v509 = vld [vmem:[%s310 + $0x30] sm:$0xff]
        %v510 = vld [vmem:[%s310 + $0x38] sm:$0xff]
        %v511 = vld [vmem:[%s310 + $0x40] sm:$0xff]
        %v512 = vld [vmem:[%s310 + $0x48] sm:$0xff]
        %v513 = vld [vmem:[%s310 + $0x50] sm:$0xff]
        %v514 = vld [vmem:[%s310 + $0x58] sm:$0xff]
        %v515 = vld [vmem:[%s310 + $0x60] sm:$0xff]
        %v516 = vld [vmem:[%s310 + $0x68] sm:$0xff]
        %v517 = vld [vmem:[%s310 + $0x70] sm:$0xff]
        %v518 = vld [vmem:[%s310 + $0x78] sm:$0xff]
        %v519 = vld [vmem:[%s315] sm:$0xff]
        %v520 = vld [vmem:[%s315 + $0x8] sm:$0xff]
        %v521 = vld [vmem:[%s315 + $0x10] sm:$0xff]
        %v522 = vld [vmem:[%s315 + $0x18] sm:$0xff]
        %v523 = vld [vmem:[%s315 + $0x20] sm:$0xff]
        %v524 = vld [vmem:[%s315 + $0x28] sm:$0xff]
        %v525 = vld [vmem:[%s315 + $0x30] sm:$0xff]
        %v526 = vld [vmem:[%s315 + $0x38] sm:$0xff]
        %v527 = vld [vmem:[%s315 + $0x40] sm:$0xff]
        %v528 = vld [vmem:[%s315 + $0x48] sm:$0xff]
        %v529 = vld [vmem:[%s315 + $0x50] sm:$0xff]
        %v530 = vld [vmem:[%s315 + $0x58] sm:$0xff]
        %v531 = vld [vmem:[%s315 + $0x60] sm:$0xff]
        %v532 = vld [vmem:[%s315 + $0x68] sm:$0xff]
        %v533 = vld [vmem:[%s315 + $0x70] sm:$0xff]
        %v534 = vld [vmem:[%s315 + $0x78] sm:$0xff]
        %535 = vmatprep.subr.mxu0 0.0
        %536 = vmatpush1.msra.mxu0 %v534
        %537 = vmatprep.subr.mxu0 0.0
        %538 = vmatpush1.msra.mxu0 %v533
        %539 = vmatprep.subr.mxu0 0.0
        %540 = vmatpush1.msra.mxu0 %v532
        %541 = vmatprep.subr.mxu0 0.0
        %542 = vmatpush1.msra.mxu0 %v531
        %543 = vmatprep.subr.mxu0 0.0
        %544 = vmatpush1.msra.mxu0 %v530
        %545 = vmatprep.subr.mxu0 0.0
        %546 = vmatpush1.msra.mxu0 %v529
        %547 = vmatprep.subr.mxu0 0.0
        %548 = vmatpush1.msra.mxu0 %v528
        %549 = vmatprep.subr.mxu0 0.0
        %550 = vmatpush1.msra.mxu0 %v527
        %551 = vmatprep.subr.mxu0 0.0
        %552 = vmatpush1.msra.mxu0 %v526
        %553 = vmatprep.subr.mxu0 0.0
        %554 = vmatpush1.msra.mxu0 %v525
        %555 = vmatprep.subr.mxu0 0.0
        %556 = vmatpush1.msra.mxu0 %v524
        %557 = vmatprep.subr.mxu0 0.0
        %558 = vmatpush1.msra.mxu0 %v523
        %559 = vmatprep.subr.mxu0 0.0
        %560 = vmatpush1.msra.mxu0 %v522
        %561 = vmatprep.subr.mxu0 0.0
        %562 = vmatpush1.msra.mxu0 %v521
        %563 = vmatprep.subr.mxu0 0.0
        %564 = vmatpush1.msra.mxu0 %v520
        %565 = vmatprep.subr.mxu0 0.0
        %566 = vmatpush1.msra.mxu0 %v519
        %567 = vmatprep.subr.mxu0 0.0
        %568 = vmatpush2.msra.mxu0 0.0
        %569 = vmatprep.subr.mxu0 0.0
        %570 = vmatpush2.msra.mxu0 0.0
        %571 = vmatprep.subr.mxu0 0.0
        %572 = vmatpush2.msra.mxu0 0.0
        %573 = vmatprep.subr.mxu0 0.0
        %574 = vmatpush2.msra.mxu0 0.0
        %575 = vmatprep.subr.mxu0 0.0
        %576 = vmatpush2.msra.mxu0 0.0
        %577 = vmatprep.subr.mxu0 0.0
        %578 = vmatpush2.msra.mxu0 0.0
        %579 = vmatprep.subr.mxu0 0.0
        %580 = vmatpush2.msra.mxu0 0.0
        %581 = vmatprep.subr.mxu0 0.0
        %582 = vmatpush2.msra.mxu0 0.0
        %583 = vmatprep.subr.mxu0 0.0
        %584 = vmatpush2.msra.mxu0 0.0
        %585 = vmatprep.subr.mxu0 0.0
        %586 = vmatpush2.msra.mxu0 0.0
        %587 = vmatprep.subr.mxu0 0.0
        %588 = vmatpush2.msra.mxu0 0.0
        %589 = vmatprep.subr.mxu0 0.0
        %590 = vmatpush2.msra.mxu0 0.0
        %591 = vmatprep.subr.mxu0 0.0
        %592 = vmatpush2.msra.mxu0 0.0
        %593 = vmatprep.subr.mxu0 0.0
        %594 = vmatpush2.msra.mxu0 0.0
        %595 = vmatprep.subr.mxu0 0.0
        %596 = vmatpush2.msra.mxu0 0.0
        %597 = vmatprep.subr.mxu0 0.0
        %598 = vmatpush2.msra.mxu0 0.0
        %599 = vmatprep.mubr.f32.mxu0 0.0
        %600 = vmatmul.mubr.f32.gmra.mxu0 %v327
        %v601 = vpop.f32.mrf.mxu0
        %v602 = vadd.f32 0.0, %v601
        %v603 = vpop.f32.mrf.mxu0
        %604 = vmatprep.mubr.f32.mxu0 0.0
        %605 = vmatmul.mubr.f32.gmra.mxu0 %v328
        %v606 = vpop.f32.mrf.mxu0
        %v607 = vadd.f32 0.0, %v606
        %v608 = vpop.f32.mrf.mxu0
        %609 = vdwg.mxu0
        %610 = vmatprep.subr.mxu0 0.0
        %611 = vmatpush1.msra.mxu0 %v518
        %612 = vmatprep.subr.mxu0 0.0
        %613 = vmatpush1.msra.mxu0 %v517
        %614 = vmatprep.subr.mxu0 0.0
        %615 = vmatpush1.msra.mxu0 %v516
        %616 = vmatprep.subr.mxu0 0.0
        %617 = vmatpush1.msra.mxu0 %v515
        %618 = vmatprep.subr.mxu0 0.0
        %619 = vmatpush1.msra.mxu0 %v514
        %620 = vmatprep.subr.mxu0 0.0
        %621 = vmatpush1.msra.mxu0 %v513
        %622 = vmatprep.subr.mxu0 0.0
        %623 = vmatpush1.msra.mxu0 %v512
        %624 = vmatprep.subr.mxu0 0.0
        %625 = vmatpush1.msra.mxu0 %v511
        %626 = vmatprep.subr.mxu0 0.0
        %627 = vmatpush1.msra.mxu0 %v510
        %628 = vmatprep.subr.mxu0 0.0
        %629 = vmatpush1.msra.mxu0 %v509
        %630 = vmatprep.subr.mxu0 0.0
        %631 = vmatpush1.msra.mxu0 %v508
        %632 = vmatprep.subr.mxu0 0.0
        %633 = vmatpush1.msra.mxu0 %v507
        %634 = vmatprep.subr.mxu0 0.0
        %635 = vmatpush1.msra.mxu0 %v506
        %636 = vmatprep.subr.mxu0 0.0
        %637 = vmatpush1.msra.mxu0 %v505
        %638 = vmatprep.subr.mxu0 0.0
        %639 = vmatpush1.msra.mxu0 %v504
        %640 = vmatprep.subr.mxu0 0.0
        %641 = vmatpush1.msra.mxu0 %v503
        %642 = vmatprep.subr.mxu0 0.0
        %643 = vmatpush2.msra.mxu0 0.0
        %644 = vmatprep.subr.mxu0 0.0
        %645 = vmatpush2.msra.mxu0 0.0
        %646 = vmatprep.subr.mxu0 0.0
        %647 = vmatpush2.msra.mxu0 0.0
        %648 = vmatprep.subr.mxu0 0.0
        %649 = vmatpush2.msra.mxu0 0.0
        %650 = vmatprep.subr.mxu0 0.0
        %651 = vmatpush2.msra.mxu0 0.0
        %652 = vmatprep.subr.mxu0 0.0
        %653 = vmatpush2.msra.mxu0 0.0
        %654 = vmatprep.subr.mxu0 0.0
        %655 = vmatpush2.msra.mxu0 0.0
        %656 = vmatprep.subr.mxu0 0.0
        %657 = vmatpush2.msra.mxu0 0.0
        %658 = vmatprep.subr.mxu0 0.0
        %659 = vmatpush2.msra.mxu0 0.0
        %660 = vmatprep.subr.mxu0 0.0
        %661 = vmatpush2.msra.mxu0 0.0
        %662 = vmatprep.subr.mxu0 0.0
        %663 = vmatpush2.msra.mxu0 0.0
        %664 = vmatprep.subr.mxu0 0.0
        %665 = vmatpush2.msra.mxu0 0.0
        %666 = vmatprep.subr.mxu0 0.0
        %667 = vmatpush2.msra.mxu0 0.0
        %668 = vmatprep.subr.mxu0 0.0
        %669 = vmatpush2.msra.mxu0 0.0
        %670 = vmatprep.subr.mxu0 0.0
        %671 = vmatpush2.msra.mxu0 0.0
        %672 = vmatprep.subr.mxu0 0.0
        %673 = vmatpush2.msra.mxu0 0.0
        %674 = vmatprep.mubr.f32.mxu0 0.0
        %675 = vmatmul.mubr.f32.gmra.mxu0 %v495
        %v676 = vpop.f32.mrf.mxu0
        %v677 = vadd.f32 %v602, %v676
        %v678 = vpop.f32.mrf.mxu0
        %679 = vmatprep.mubr.f32.mxu0 0.0
        %680 = vmatmul.mubr.f32.gmra.mxu0 %v500
        %v681 = vpop.f32.mrf.mxu0
        %v682 = vadd.f32 %v607, %v681
        %v683 = vpop.f32.mrf.mxu0
        %684 = vdwg.mxu0
        %v685 = vld [vmem:[%s318] sm:$0x1]
        %v687 = vlaneseq
        %v688 = vshrl.u32 %v687, 7
        %v689 = vsub.s32 0, %v688
        %v690 = vrot.slane %v685, %v689
        %v692 = vadd.f32 %v677, %v690
        %v693 = vadd.f32 %v682, %v690
        %v694 = vmax.f32 %v692, 0.0
        %v695 = vmax.f32 %v693, 0.0
        %696 = vst [vmem:[#allocation2] sm:$0xff] %v694
        %697 = vst [vmem:[#allocation2 + $0x8] sm:$0xff] %v695
        %p698 = scmp.eq.s32.totalorder %s19, 2
        // Predicated region
        $region53: #{gnn_forward.1} parent=47 // pred_check
          %p699 = pneg %p698
        $region54: #{gnn_forward.1} parent=47 // pred_check_branch
          %701 = sbr.rel (%p699) target = $region56
        $region55: #{gnn_forward.1} parent=47 // pred_region
          %702 = vst [vmem:[#allocation3] sm:$0xff] %v694
          %703 = vst [vmem:[#allocation3 + $0x8] sm:$0xff] %v695
        $region56: #{gnn_forward.1} parent=47 // pred_fallthru
          _
        // Predicated region
        $region57: #{gnn_forward.1} parent=47 // pred_check
          %p704 = pneg %p199
        $region58: #{gnn_forward.1} parent=47 // pred_check_branch
          %706 = sbr.rel (%p704) target = $region60
        $region59: #{gnn_forward.1} parent=47 // pred_region
          %s708 = ssub.s32 256, 256
          %709 = vsyncadd [#allocation4], %s708
          %s710 = sshll.u32 [#allocation3], 4
          %s711 = int_to_ptr.vmem [resolvable:$true] %s710
          %716 = dma.vmem_to_hbm [thread:$0]  %s711, 256, %s7, [#allocation4], 128, 128, 8
        $region60: #{gnn_forward.1} parent=47 // pred_fallthru
          _
        // Predicated region
        $region61: #{gnn_forward.1} parent=47 // pred_check
          %p717 = pneg %p199
        $region62: #{gnn_forward.1} parent=47 // pred_check_branch
          %719 = sbr.rel (%p717) target = $region64
        $region63: #{gnn_forward.1} parent=47 // pred_region
          %720 = dma.done [#allocation4], 256
        $region64: #{gnn_forward.1} parent=47 // pred_fallthru
          _
      $region48: #{gnn_forward.1} parent=5 // pred_fallthru
        _
      %p721 = scmp.le.s32.totalorder 2, %s14
      // Predicated region
      $region65: #{gnn_forward.1} parent=5 // pred_check
        %p722 = pneg %p721
      $region66: #{gnn_forward.1} parent=5 // pred_check_branch
        %724 = sbr.rel (%p722) target = $region68
      $region67: #{gnn_forward.1} parent=5 // pred_region
        %s725 = ssub.s32 %s14, 2
      $region68: #{gnn_forward.1} parent=5 // pred_fallthru
        _
    $region6: #{gnn_forward.1} parent=1 // loop_footer
      %s18 = sadd.s32 1, %s14
    $region7: #{gnn_forward.1} parent=1 // loop_footer_branch
      %13 = sbr.rel target = $region3
    $region8: #{gnn_forward.1} parent=1 // loop_exit
      _
    %726 = vsyncpa [#allocation4], 1
    %s727 = scalar_lea.sflag [#allocation4], 1
    %728 = vsyncpa %s727, 1

</llo_original>
